<compile_context>
chip_gen: v7x
topology: tpu7x:2x2x1
jax: 0.10.0
libtpu: 0.0.40
codegen_flags: <defaults>
</compile_context>

<pallas_src>
from functools import partial

import jax
import jax.numpy as jnp
from jax.experimental import pallas as pl
from jax.experimental.pallas import tpu as pltpu

INPUT_LENGTH = 100
N_UNITS = 50
N_LAYERS = 3  # layer 0: 100 -> 50, then (N_LAYERS - 1) layers: 50 -> 50
LANE = 128


def _round_up(n, m):
    return ((n + m - 1) // m) * m


def _make_fused_mlp_kernel(n_layers, f_in, n_out):
    """Kernel body.

    refs = (x, w0, b0, ..., w_{L-1}, b_{L-1}, out, xpad_scratch)

    All operands are full-extent VMEM blocks; intermediate activations stay
    in vregs/VMEM as SSA values — nothing goes back to HBM between layers.
    The input is zero-padded to the 128-lane width in-kernel, and the output
    is written at its true width directly (single masked store)."""

    def kernel(*refs):
        x_ref = refs[0]
        o_ref = refs[1 + 2 * n_layers]
        xpad = refs[2 + 2 * n_layers]  # VMEM scratch (B, f_in_pad)

        # In-kernel zero-pad of the input feature axis (lanes f_in..127 = 0),
        # replacing the old wrapper-side pad HLO.
        xpad[...] = jnp.zeros_like(xpad)
        xpad[:, :f_in] = x_ref[...]
        h = xpad[...]

        for l in range(n_layers):
            w_ref = refs[1 + 2 * l]
            b_ref = refs[2 + 2 * l]
            y = jnp.dot(h, w_ref[...], preferred_element_type=jnp.float32)
            y = y + b_ref[...]
            h = jnp.maximum(y, 0.0)

        # Write the true output width directly (one masked vst; no XLA slice).
        o_ref[...] = h[:, :n_out].astype(o_ref.dtype)

    return kernel


def init_params(key, n_layers=N_LAYERS, n_units=N_UNITS,
                input_length=INPUT_LENGTH):
    """Deterministic init mirroring nn.Linear (uniform +/- 1/sqrt(fan_in)).

    Returns:
      params:        list of (w, b) with true shapes (f_in, f_out), (1, f_out)
      padded_params: same weights zero-padded to 128-multiples, used by the
                     fused kernel (padded rows/cols/bias lanes are zero so the
                     math is unchanged)."""
    params = []
    padded_params = []
    dims = [(input_length, n_units)] + [(n_units, n_units)] * (n_layers - 1)
    for (f_in, f_out) in dims:
        key, kw, kb = jax.random.split(key, 3)
        bound = 1.0 / jnp.sqrt(jnp.float32(f_in))
        w = jax.random.uniform(kw, (f_in, f_out), jnp.float32, -bound, bound)
        b = jax.random.uniform(kb, (1, f_out), jnp.float32, -bound, bound)
        params.append((w, b))

        f_in_p = _round_up(f_in, LANE)
        f_out_p = _round_up(f_out, LANE)
        w_p = jnp.zeros((f_in_p, f_out_p), jnp.float32).at[:f_in, :f_out].set(w)
        b_p = jnp.zeros((1, f_out_p), jnp.float32).at[:, :f_out].set(b)
        padded_params.append((w_p, b_p))
    return params, padded_params


@partial(jax.jit, static_argnames=("n_out",))
def input_sub_block_forward(x, padded_params, n_out=N_UNITS):
    """Fused forward: the entire layer stack is a single pallas_call, with no
    surrounding pad/slice HLOs."""
    B, f_in = x.shape
    n_layers = len(padded_params)
    f_in_pad = padded_params[0][0].shape[0]

    args = [x]
    for (w, b) in padded_params:
        args.append(w)
        args.append(b)

    vmem_spec = pl.BlockSpec(memory_space=pltpu.MemorySpace.VMEM)

    out = pl.pallas_call(
        _make_fused_mlp_kernel(n_layers, f_in, n_out),
        out_shape=jax.ShapeDtypeStruct((B, n_out), x.dtype),
        in_specs=[vmem_spec] * len(args),
        out_specs=vmem_spec,
        scratch_shapes=[pltpu.VMEM((B, f_in_pad), jnp.float32)],
    )(*args)
    return out


if __name__ == "__main__":
    key = jax.random.PRNGKey(0)
    key, kx = jax.random.split(key)

    B = 8  # small batch (multiple of the f32 sublane width)
    x = jax.random.normal(kx, (B, INPUT_LENGTH), jnp.float32)

    params, padded_params = init_params(key)

    out = input_sub_block_forward(x, padded_params)
    out = jax.block_until_ready(out)

    # Reference check in plain JAX with the unpadded weights.
    ref = x
    for (w, b) in params:
        ref = jnp.maximum(ref @ w + b, 0.0)

    assert out.shape == (B, N_UNITS)
    assert jnp.allclose(out, ref, atol=1e-5, rtol=1e-5)

    print("KERNEL_OK")
</pallas_src>

<mosaic_0001>
module attributes {stable_mosaic.version = 11 : i64} {
  func.func @kernel(%arg0: memref<8x100xf32, #tpu.memory_space<vmem>>, %arg1: memref<128x128xf32, #tpu.memory_space<vmem>>, %arg2: memref<1x128xf32, #tpu.memory_space<vmem>>, %arg3: memref<128x128xf32, #tpu.memory_space<vmem>>, %arg4: memref<1x128xf32, #tpu.memory_space<vmem>>, %arg5: memref<128x128xf32, #tpu.memory_space<vmem>>, %arg6: memref<1x128xf32, #tpu.memory_space<vmem>>, %arg7: memref<8x50xf32, #tpu.memory_space<vmem>>, %arg8: memref<8x128xf32, #tpu.memory_space<vmem>>) attributes {dimension_semantics = [], scalar_prefetch = 0 : i64, scratch_operands = 1 : i64, tpu.core_type = #tpu.core_type<tc>} {
    %cst = arith.constant 0.000000e+00 : f32
    %0 = vector.broadcast %cst : f32 to vector<8x128xf32>
    %c0 = arith.constant 0 : index
    %c0_0 = arith.constant 0 : index
    %1 = vector.load %arg8[%c0, %c0_0] : memref<8x128xf32, #tpu.memory_space<vmem>>, vector<8x128xf32>
    tpu.vector_store %arg8[%c0, %c0_0], %0 {strides = array<i32>} : memref<8x128xf32, #tpu.memory_space<vmem>>, vector<8x128xf32>,
    %c0_1 = arith.constant 0 : index
    %c0_2 = arith.constant 0 : index
    %2 = vector.load %arg0[%c0_1, %c0_2] : memref<8x100xf32, #tpu.memory_space<vmem>>, vector<8x100xf32>
    %c0_3 = arith.constant 0 : index
    %c0_4 = arith.constant 0 : index
    %3 = vector.load %arg8[%c0_3, %c0_4] : memref<8x128xf32, #tpu.memory_space<vmem>>, vector<8x100xf32>
    tpu.vector_store %arg8[%c0_3, %c0_4], %2 {strides = array<i32>} : memref<8x128xf32, #tpu.memory_space<vmem>>, vector<8x100xf32>,
    %c0_5 = arith.constant 0 : index
    %c0_6 = arith.constant 0 : index
    %4 = vector.load %arg8[%c0_5, %c0_6] : memref<8x128xf32, #tpu.memory_space<vmem>>, vector<8x128xf32>
    %c0_7 = arith.constant 0 : index
    %c0_8 = arith.constant 0 : index
    %5 = vector.load %arg1[%c0_7, %c0_8] : memref<128x128xf32, #tpu.memory_space<vmem>>, vector<128x128xf32>
    %cst_9 = arith.constant dense<0.000000e+00> : vector<8x128xf32>
    %6 = tpu.matmul %4, %5, %cst_9 {dimension_numbers = #tpu.dot_dimension_numbers<[1], [0], [0], [1], [0, 0, 1, 1], [], []>} : vector<8x128xf32>, vector<128x128xf32>, vector<8x128xf32> -> vector<8x128xf32>
    %c0_10 = arith.constant 0 : index
    %c0_11 = arith.constant 0 : index
    %7 = vector.load %arg2[%c0_10, %c0_11] : memref<1x128xf32, #tpu.memory_space<vmem>>, vector<1x128xf32>
    %8 = vector.broadcast %7 : vector<1x128xf32> to vector<8x128xf32>
    %9 = arith.addf %6, %8 : vector<8x128xf32>
    %cst_12 = arith.constant 0.000000e+00 : f32
    %10 = vector.broadcast %cst_12 : f32 to vector<8x128xf32>
    %11 = arith.maximumf %9, %10 : vector<8x128xf32>
    %c0_13 = arith.constant 0 : index
    %c0_14 = arith.constant 0 : index
    %12 = vector.load %arg3[%c0_13, %c0_14] : memref<128x128xf32, #tpu.memory_space<vmem>>, vector<128x128xf32>
    %cst_15 = arith.constant dense<0.000000e+00> : vector<8x128xf32>
    %13 = tpu.matmul %11, %12, %cst_15 {dimension_numbers = #tpu.dot_dimension_numbers<[1], [0], [0], [1], [0, 0, 1, 1], [], []>} : vector<8x128xf32>, vector<128x128xf32>, vector<8x128xf32> -> vector<8x128xf32>
    %c0_16 = arith.constant 0 : index
    %c0_17 = arith.constant 0 : index
    %14 = vector.load %arg4[%c0_16, %c0_17] : memref<1x128xf32, #tpu.memory_space<vmem>>, vector<1x128xf32>
    %15 = vector.broadcast %14 : vector<1x128xf32> to vector<8x128xf32>
    %16 = arith.addf %13, %15 : vector<8x128xf32>
    %cst_18 = arith.constant 0.000000e+00 : f32
    %17 = vector.broadcast %cst_18 : f32 to vector<8x128xf32>
    %18 = arith.maximumf %16, %17 : vector<8x128xf32>
    %c0_19 = arith.constant 0 : index
    %c0_20 = arith.constant 0 : index
    %19 = vector.load %arg5[%c0_19, %c0_20] : memref<128x128xf32, #tpu.memory_space<vmem>>, vector<128x128xf32>
    %cst_21 = arith.constant dense<0.000000e+00> : vector<8x128xf32>
    %20 = tpu.matmul %18, %19, %cst_21 {dimension_numbers = #tpu.dot_dimension_numbers<[1], [0], [0], [1], [0, 0, 1, 1], [], []>} : vector<8x128xf32>, vector<128x128xf32>, vector<8x128xf32> -> vector<8x128xf32>
    %c0_22 = arith.constant 0 : index
    %c0_23 = arith.constant 0 : index
    %21 = vector.load %arg6[%c0_22, %c0_23] : memref<1x128xf32, #tpu.memory_space<vmem>>, vector<1x128xf32>
    %22 = vector.broadcast %21 : vector<1x128xf32> to vector<8x128xf32>
    %23 = arith.addf %20, %22 : vector<8x128xf32>
    %cst_24 = arith.constant 0.000000e+00 : f32
    %24 = vector.broadcast %cst_24 : f32 to vector<8x128xf32>
    %25 = arith.maximumf %23, %24 : vector<8x128xf32>
    %26 = vector.extract_strided_slice %25 {offsets = [0, 0], sizes = [8, 50], strides = [1, 1]} : vector<8x128xf32> to vector<8x50xf32>
    %c0_25 = arith.constant 0 : index
    %c0_26 = arith.constant 0 : index
    %27 = vector.load %arg7[%c0_25, %c0_26] : memref<8x50xf32, #tpu.memory_space<vmem>>, vector<8x50xf32>
    tpu.vector_store %arg7[%c0_25, %c0_26], %26 {strides = array<i32>} : memref<8x50xf32, #tpu.memory_space<vmem>>, vector<8x50xf32>,
    return
  }
}

</mosaic_0001>

<llo_original>
// kernel: input_sub_block_forward.1
$region0: #{input_sub_block_forward.1}
  #allocation0 [shape = 'u32[]', space=smem, size = 0x4, offset = 0x4, fixed_abs, tag = 'smem constant byte address 0x4 - core index']
  #allocation1 [shape = 'u32[144,128]{1,0:T(1,128)}', space=vmem, size = 0x12000, scoped, tag = 'internal scratch']
  #allocation2 [shape = 'f32[8,128]{1,0:T(8,128)}', space=vmem, size = 0x1000, scoped, tag = 'scratch operand']
  %s0 = inlined_call_operand.hbm [shape: f32[8,100], index: 0, kind: input, shape index: {}]
  %s1 = inlined_call_operand.hbm [shape: f32[128,128], index: 1, kind: input, shape index: {}]
  %s2 = inlined_call_operand.vmem [shape: f32[1,128], index: 2, kind: input, shape index: {}]
  %s3 = inlined_call_operand.hbm [shape: f32[128,128], index: 3, kind: input, shape index: {}]
  %s4 = inlined_call_operand.vmem [shape: f32[1,128], index: 4, kind: input, shape index: {}]
  %s5 = inlined_call_operand.hbm [shape: f32[128,128], index: 5, kind: input, shape index: {}]
  %s6 = inlined_call_operand.vmem [shape: f32[1,128], index: 6, kind: input, shape index: {}]
  %s7 = inlined_call_operand.hbm [shape: f32[8,50], index: 7, kind: output, shape index: {}]
  %s8 = sld [smem:[#allocation0]]
  $region54: #{input_sub_block_forward.1} parent=0
    _
  %s10 = ssub.s32 1, %s8
  %s11 = scalar_select 0, %s10, %s8
  $region1: #{input_sub_block_forward.1} parent=0
    #allocation3 [shape = 'u8[4096]{0}', space=vmem, size = 0x1000, scoped, tag = 'input window, operand 0, single buffered']
    #allocation4 [shape = 's32[1]{0}', space=sflag, size = 0x4, scoped, tag = 'scoped memory for input_sub_block_forward.1']
    #allocation5 [shape = 's32[1]{0}', space=sflag, size = 0x4, scoped, tag = 'scoped memory for input_sub_block_forward.1']
    #allocation6 [shape = 'u8[65536]{0}', space=vmem, size = 0x10000, scoped, tag = 'input window, operand 1, single buffered']
    #allocation7 [shape = 's32[1]{0}', space=sflag, size = 0x4, scoped, tag = 'scoped memory for input_sub_block_forward.1']
    #allocation8 [shape = 'u8[65536]{0}', space=vmem, size = 0x10000, scoped, tag = 'input window, operand 3, single buffered']
    #allocation9 [shape = 'u8[65536]{0}', space=vmem, size = 0x10000, scoped, tag = 'input window, operand 5, single buffered']
    #allocation10 [shape = 's32[1]{0}', space=sflag, size = 0x4, scoped, tag = 'scoped memory for input_sub_block_forward.1']
    #allocation11 [shape = 'u8[4096]{0}', space=vmem, size = 0x1000, scoped, tag = 'output window, operand 0, single buffered']
    %12 = vsyncpa [#allocation4], 0
    %13 = vsyncpa [#allocation7], 0
    %14 = vsyncpa [#allocation10], 0
    %15 = vsyncpa [#allocation5], 0
    // Predicated region
    $region2: #{input_sub_block_forward.1} parent=1 // pred_check
      _
    $region3: #{input_sub_block_forward.1} parent=1 // pred_check_branch
      %17 = sbr.rel (0) target = $region5
    $region4: #{input_sub_block_forward.1} parent=1 // pred_region
      %s19 = ssub.s32 128, 128
      %20 = vsyncadd [#allocation4], %s19
      %s22 = sshll.u32 [#allocation3], 4
      %s23 = int_to_ptr.vmem [resolvable:$true] %s22
      %25 = dma.hbm_to_vmem [thread:$0]  %s0, 128, %s23, [#allocation4]
    $region5: #{input_sub_block_forward.1} parent=1 // pred_fallthru
      _
    // Predicated region
    $region6: #{input_sub_block_forward.1} parent=1 // pred_check
      _
    $region7: #{input_sub_block_forward.1} parent=1 // pred_check_branch
      %27 = sbr.rel (0) target = $region9
    $region8: #{input_sub_block_forward.1} parent=1 // pred_region
      %s29 = ssub.s32 2048, 2048
      %30 = vsyncadd [#allocation7], %s29
      %s31 = sshll.u32 [#allocation6], 4
      %s32 = int_to_ptr.vmem [resolvable:$true] %s31
      %37 = dma.hbm_to_vmem [thread:$0]  %s1, 2048, %s32, [#allocation7], 128, 128, 8
    $region9: #{input_sub_block_forward.1} parent=1 // pred_fallthru
      _
    // Predicated region
    $region10: #{input_sub_block_forward.1} parent=1 // pred_check
      _
    $region11: #{input_sub_block_forward.1} parent=1 // pred_check_branch
      %39 = sbr.rel (0) target = $region13
    $region12: #{input_sub_block_forward.1} parent=1 // pred_region
      _
    $region13: #{input_sub_block_forward.1} parent=1 // pred_fallthru
      _
    // Predicated region
    $region14: #{input_sub_block_forward.1} parent=1 // pred_check
      _
    $region15: #{input_sub_block_forward.1} parent=1 // pred_check_branch
      %41 = sbr.rel (0) target = $region17
    $region16: #{input_sub_block_forward.1} parent=1 // pred_region
      %s43 = ssub.s32 2048, 2048
      %44 = vsyncadd [#allocation7], %s43
      %s45 = sshll.u32 [#allocation8], 4
      %s46 = int_to_ptr.vmem [resolvable:$true] %s45
      %51 = dma.hbm_to_vmem [thread:$0]  %s3, 2048, %s46, [#allocation7], 128, 128, 8
    $region17: #{input_sub_block_forward.1} parent=1 // pred_fallthru
      _
    // Predicated region
    $region18: #{input_sub_block_forward.1} parent=1 // pred_check
      _
    $region19: #{input_sub_block_forward.1} parent=1 // pred_check_branch
      %53 = sbr.rel (0) target = $region21
    $region20: #{input_sub_block_forward.1} parent=1 // pred_region
      _
    $region21: #{input_sub_block_forward.1} parent=1 // pred_fallthru
      _
    // Predicated region
    $region22: #{input_sub_block_forward.1} parent=1 // pred_check
      _
    $region23: #{input_sub_block_forward.1} parent=1 // pred_check_branch
      %55 = sbr.rel (0) target = $region25
    $region24: #{input_sub_block_forward.1} parent=1 // pred_region
      %s57 = ssub.s32 2048, 2048
      %58 = vsyncadd [#allocation10], %s57
      %s59 = sshll.u32 [#allocation9], 4
      %s60 = int_to_ptr.vmem [resolvable:$true] %s59
      %65 = dma.hbm_to_vmem [thread:$0]  %s5, 2048, %s60, [#allocation10], 128, 128, 8
    $region25: #{input_sub_block_forward.1} parent=1 // pred_fallthru
      _
    // Predicated region
    $region26: #{input_sub_block_forward.1} parent=1 // pred_check
      _
    $region27: #{input_sub_block_forward.1} parent=1 // pred_check_branch
      %67 = sbr.rel (0) target = $region29
    $region28: #{input_sub_block_forward.1} parent=1 // pred_region
      _
    $region29: #{input_sub_block_forward.1} parent=1 // pred_fallthru
      _
    // Predicated region
    $region30: #{input_sub_block_forward.1} parent=1 // pred_check
      _
    $region31: #{input_sub_block_forward.1} parent=1 // pred_check_branch
      %69 = sbr.rel (0) target = $region33
    $region32: #{input_sub_block_forward.1} parent=1 // pred_region
      %70 = dma.done [#allocation4], 128
    $region33: #{input_sub_block_forward.1} parent=1 // pred_fallthru
      _
    // Predicated region
    $region34: #{input_sub_block_forward.1} parent=1 // pred_check
      _
    $region35: #{input_sub_block_forward.1} parent=1 // pred_check_branch
      %72 = sbr.rel (0) target = $region37
    $region36: #{input_sub_block_forward.1} parent=1 // pred_region
      %73 = dma.done [#allocation7], 2048
    $region37: #{input_sub_block_forward.1} parent=1 // pred_fallthru
      _
    // Predicated region
    $region38: #{input_sub_block_forward.1} parent=1 // pred_check
      _
    $region39: #{input_sub_block_forward.1} parent=1 // pred_check_branch
      %75 = sbr.rel (0) target = $region41
    $region40: #{input_sub_block_forward.1} parent=1 // pred_region
      %76 = dma.done [#allocation7], 2048
    $region41: #{input_sub_block_forward.1} parent=1 // pred_fallthru
      _
    // Predicated region
    $region42: #{input_sub_block_forward.1} parent=1 // pred_check
      _
    $region43: #{input_sub_block_forward.1} parent=1 // pred_check_branch
      %78 = sbr.rel (0) target = $region45
    $region44: #{input_sub_block_forward.1} parent=1 // pred_region
      %79 = dma.done [#allocation10], 2048
    $region45: #{input_sub_block_forward.1} parent=1 // pred_fallthru
      _
    %80 = vst [vmem:[#allocation2] sm:$0xff] 0.0
    %v81 = vld [vmem:[#allocation3] sm:$0xff]
    %vm82 = vcmask 818176
    %83 = vst.msk [vmem:[#allocation2] sm:$0xff] %vm82, %v81
    %v84 = vld [vmem:[#allocation2] sm:$0xff]
    %v85 = vld [vmem:[#allocation6] sm:$0xff]
    %v86 = vld [vmem:[#allocation6 + $0x8] sm:$0xff]
    %v87 = vld [vmem:[#allocation6 + $0x10] sm:$0xff]
    %v88 = vld [vmem:[#allocation6 + $0x18] sm:$0xff]
    %v89 = vld [vmem:[#allocation6 + $0x20] sm:$0xff]
    %v90 = vld [vmem:[#allocation6 + $0x28] sm:$0xff]
    %v91 = vld [vmem:[#allocation6 + $0x30] sm:$0xff]
    %v92 = vld [vmem:[#allocation6 + $0x38] sm:$0xff]
    %v93 = vld [vmem:[#allocation6 + $0x40] sm:$0xff]
    %v94 = vld [vmem:[#allocation6 + $0x48] sm:$0xff]
    %v95 = vld [vmem:[#allocation6 + $0x50] sm:$0xff]
    %v96 = vld [vmem:[#allocation6 + $0x58] sm:$0xff]
    %v97 = vld [vmem:[#allocation6 + $0x60] sm:$0xff]
    %v98 = vld [vmem:[#allocation6 + $0x68] sm:$0xff]
    %v99 = vld [vmem:[#allocation6 + $0x70] sm:$0xff]
    %v100 = vld [vmem:[#allocation6 + $0x78] sm:$0xff]
    %v101 = vld [vmem:[%s2] sm:$0x1]
    %v103 = vlaneseq
    %v104 = vshrl.u32 %v103, 7
    %v105 = vsub.s32 0, %v104
    %v106 = vrot.slane %v101, %v105
    %108 = vmatprep.subr.mxu0 0.0
    %109 = vmatpush1.msra.mxu0 %v85
    %110 = vmatprep.subr.mxu0 0.0
    %111 = vmatpush1.msra.mxu0 %v86
    %112 = vmatprep.subr.mxu0 0.0
    %113 = vmatpush1.msra.mxu0 %v87
    %114 = vmatprep.subr.mxu0 0.0
    %115 = vmatpush1.msra.mxu0 %v88
    %116 = vmatprep.subr.mxu0 0.0
    %117 = vmatpush1.msra.mxu0 %v89
    %118 = vmatprep.subr.mxu0 0.0
    %119 = vmatpush1.msra.mxu0 %v90
    %120 = vmatprep.subr.mxu0 0.0
    %121 = vmatpush1.msra.mxu0 %v91
    %122 = vmatprep.subr.mxu0 0.0
    %123 = vmatpush1.msra.mxu0 %v92
    %124 = vmatprep.subr.mxu0 0.0
    %125 = vmatpush1.msra.mxu0 %v93
    %126 = vmatprep.subr.mxu0 0.0
    %127 = vmatpush1.msra.mxu0 %v94
    %128 = vmatprep.subr.mxu0 0.0
    %129 = vmatpush1.msra.mxu0 %v95
    %130 = vmatprep.subr.mxu0 0.0
    %131 = vmatpush1.msra.mxu0 %v96
    %132 = vmatprep.subr.mxu0 0.0
    %133 = vmatpush1.msra.mxu0 %v97
    %134 = vmatprep.subr.mxu0 0.0
    %135 = vmatpush1.msra.mxu0 %v98
    %136 = vmatprep.subr.mxu0 0.0
    %137 = vmatpush1.msra.mxu0 %v99
    %138 = vmatprep.subr.mxu0 0.0
    %139 = vmatpush1.msra.mxu0 %v100
    %140 = vmatprep.subr.mxu0 0.0
    %141 = vmatpush1.msra.mxu0 0.0
    %142 = vmatprep.subr.mxu0 0.0
    %143 = vmatpush1.msra.mxu0 0.0
    %144 = vmatprep.subr.mxu0 0.0
    %145 = vmatpush1.msra.mxu0 0.0
    %146 = vmatprep.subr.mxu0 0.0
    %147 = vmatpush1.msra.mxu0 0.0
    %148 = vmatprep.subr.mxu0 0.0
    %149 = vmatpush1.msra.mxu0 0.0
    %150 = vmatprep.subr.mxu0 0.0
    %151 = vmatpush1.msra.mxu0 0.0
    %152 = vmatprep.subr.mxu0 0.0
    %153 = vmatpush1.msra.mxu0 0.0
    %154 = vmatprep.subr.mxu0 0.0
    %155 = vmatpush1.msra.mxu0 0.0
    %156 = vmatprep.subr.mxu0 0.0
    %157 = vmatpush1.msra.mxu0 0.0
    %158 = vmatprep.subr.mxu0 0.0
    %159 = vmatpush1.msra.mxu0 0.0
    %160 = vmatprep.subr.mxu0 0.0
    %161 = vmatpush1.msra.mxu0 0.0
    %162 = vmatprep.subr.mxu0 0.0
    %163 = vmatpush1.msra.mxu0 0.0
    %164 = vmatprep.subr.mxu0 0.0
    %165 = vmatpush1.msra.mxu0 0.0
    %166 = vmatprep.subr.mxu0 0.0
    %167 = vmatpush1.msra.mxu0 0.0
    %168 = vmatprep.subr.mxu0 0.0
    %169 = vmatpush1.msra.mxu0 0.0
    %170 = vmatprep.subr.mxu0 0.0
    %171 = vmatpush1.msra.mxu0 0.0
    %172 = vmatprep.mubr.f32.mxu0 0.0
    %173 = vmatmul.mubr.f32.gmra.mrb[0].mxu0 %v84
    %v174 = vpop.f32.mrb[0].mxu0
    %v175 = vadd.f32 %v106, %v174
    %v176 = vpop.f32.mrb[0].mxu0
    %177 = vdwg.mxu0
    %v178 = vmax.f32 %v175, 0.0
    %v179 = vld [vmem:[#allocation8] sm:$0xff]
    %v180 = vld [vmem:[#allocation8 + $0x8] sm:$0xff]
    %v181 = vld [vmem:[#allocation8 + $0x10] sm:$0xff]
    %v182 = vld [vmem:[#allocation8 + $0x18] sm:$0xff]
    %v183 = vld [vmem:[#allocation8 + $0x20] sm:$0xff]
    %v184 = vld [vmem:[#allocation8 + $0x28] sm:$0xff]
    %v185 = vld [vmem:[#allocation8 + $0x30] sm:$0xff]
    %v186 = vld [vmem:[#allocation8 + $0x38] sm:$0xff]
    %v187 = vld [vmem:[#allocation8 + $0x40] sm:$0xff]
    %v188 = vld [vmem:[#allocation8 + $0x48] sm:$0xff]
    %v189 = vld [vmem:[#allocation8 + $0x50] sm:$0xff]
    %v190 = vld [vmem:[#allocation8 + $0x58] sm:$0xff]
    %v191 = vld [vmem:[#allocation8 + $0x60] sm:$0xff]
    %v192 = vld [vmem:[#allocation8 + $0x68] sm:$0xff]
    %v193 = vld [vmem:[#allocation8 + $0x70] sm:$0xff]
    %v194 = vld [vmem:[#allocation8 + $0x78] sm:$0xff]
    %v195 = vld [vmem:[%s4] sm:$0x1]
    %v197 = vlaneseq
    %v198 = vshrl.u32 %v197, 7
    %v199 = vsub.s32 0, %v198
    %v200 = vrot.slane %v195, %v199
    %202 = vmatprep.subr.mxu0 0.0
    %203 = vmatpush1.msra.mxu0 %v179
    %204 = vmatprep.subr.mxu0 0.0
    %205 = vmatpush1.msra.mxu0 %v180
    %206 = vmatprep.subr.mxu0 0.0
    %207 = vmatpush1.msra.mxu0 %v181
    %208 = vmatprep.subr.mxu0 0.0
    %209 = vmatpush1.msra.mxu0 %v182
    %210 = vmatprep.subr.mxu0 0.0
    %211 = vmatpush1.msra.mxu0 %v183
    %212 = vmatprep.subr.mxu0 0.0
    %213 = vmatpush1.msra.mxu0 %v184
    %214 = vmatprep.subr.mxu0 0.0
    %215 = vmatpush1.msra.mxu0 %v185
    %216 = vmatprep.subr.mxu0 0.0
    %217 = vmatpush1.msra.mxu0 %v186
    %218 = vmatprep.subr.mxu0 0.0
    %219 = vmatpush1.msra.mxu0 %v187
    %220 = vmatprep.subr.mxu0 0.0
    %221 = vmatpush1.msra.mxu0 %v188
    %222 = vmatprep.subr.mxu0 0.0
    %223 = vmatpush1.msra.mxu0 %v189
    %224 = vmatprep.subr.mxu0 0.0
    %225 = vmatpush1.msra.mxu0 %v190
    %226 = vmatprep.subr.mxu0 0.0
    %227 = vmatpush1.msra.mxu0 %v191
    %228 = vmatprep.subr.mxu0 0.0
    %229 = vmatpush1.msra.mxu0 %v192
    %230 = vmatprep.subr.mxu0 0.0
    %231 = vmatpush1.msra.mxu0 %v193
    %232 = vmatprep.subr.mxu0 0.0
    %233 = vmatpush1.msra.mxu0 %v194
    %234 = vmatprep.subr.mxu0 0.0
    %235 = vmatpush1.msra.mxu0 0.0
    %236 = vmatprep.subr.mxu0 0.0
    %237 = vmatpush1.msra.mxu0 0.0
    %238 = vmatprep.subr.mxu0 0.0
    %239 = vmatpush1.msra.mxu0 0.0
    %240 = vmatprep.subr.mxu0 0.0
    %241 = vmatpush1.msra.mxu0 0.0
    %242 = vmatprep.subr.mxu0 0.0
    %243 = vmatpush1.msra.mxu0 0.0
    %244 = vmatprep.subr.mxu0 0.0
    %245 = vmatpush1.msra.mxu0 0.0
    %246 = vmatprep.subr.mxu0 0.0
    %247 = vmatpush1.msra.mxu0 0.0
    %248 = vmatprep.subr.mxu0 0.0
    %249 = vmatpush1.msra.mxu0 0.0
    %250 = vmatprep.subr.mxu0 0.0
    %251 = vmatpush1.msra.mxu0 0.0
    %252 = vmatprep.subr.mxu0 0.0
    %253 = vmatpush1.msra.mxu0 0.0
    %254 = vmatprep.subr.mxu0 0.0
    %255 = vmatpush1.msra.mxu0 0.0
    %256 = vmatprep.subr.mxu0 0.0
    %257 = vmatpush1.msra.mxu0 0.0
    %258 = vmatprep.subr.mxu0 0.0
    %259 = vmatpush1.msra.mxu0 0.0
    %260 = vmatprep.subr.mxu0 0.0
    %261 = vmatpush1.msra.mxu0 0.0
    %262 = vmatprep.subr.mxu0 0.0
    %263 = vmatpush1.msra.mxu0 0.0
    %264 = vmatprep.subr.mxu0 0.0
    %265 = vmatpush1.msra.mxu0 0.0
    %266 = vmatprep.mubr.f32.mxu0 0.0
    %267 = vmatmul.mubr.f32.gmra.mrb[0].mxu0 %v178
    %v268 = vpop.f32.mrb[0].mxu0
    %v269 = vadd.f32 %v200, %v268
    %v270 = vpop.f32.mrb[0].mxu0
    %271 = vdwg.mxu0
    %v272 = vmax.f32 %v269, 0.0
    %v273 = vld [vmem:[#allocation9] sm:$0xff]
    %v274 = vld [vmem:[#allocation9 + $0x8] sm:$0xff]
    %v275 = vld [vmem:[#allocation9 + $0x10] sm:$0xff]
    %v276 = vld [vmem:[#allocation9 + $0x18] sm:$0xff]
    %v277 = vld [vmem:[#allocation9 + $0x20] sm:$0xff]
    %v278 = vld [vmem:[#allocation9 + $0x28] sm:$0xff]
    %v279 = vld [vmem:[#allocation9 + $0x30] sm:$0xff]
    %v280 = vld [vmem:[#allocation9 + $0x38] sm:$0xff]
    %v281 = vld [vmem:[#allocation9 + $0x40] sm:$0xff]
    %v282 = vld [vmem:[#allocation9 + $0x48] sm:$0xff]
    %v283 = vld [vmem:[#allocation9 + $0x50] sm:$0xff]
    %v284 = vld [vmem:[#allocation9 + $0x58] sm:$0xff]
    %v285 = vld [vmem:[#allocation9 + $0x60] sm:$0xff]
    %v286 = vld [vmem:[#allocation9 + $0x68] sm:$0xff]
    %v287 = vld [vmem:[#allocation9 + $0x70] sm:$0xff]
    %v288 = vld [vmem:[#allocation9 + $0x78] sm:$0xff]
    %v289 = vld [vmem:[%s6] sm:$0x1]
    %v291 = vlaneseq
    %v292 = vshrl.u32 %v291, 7
    %v293 = vsub.s32 0, %v292
    %v294 = vrot.slane %v289, %v293
    %296 = vmatprep.subr.mxu0 0.0
    %297 = vmatpush1.msra.mxu0 %v273
    %298 = vmatprep.subr.mxu0 0.0
    %299 = vmatpush1.msra.mxu0 %v274
    %300 = vmatprep.subr.mxu0 0.0
    %301 = vmatpush1.msra.mxu0 %v275
    %302 = vmatprep.subr.mxu0 0.0
    %303 = vmatpush1.msra.mxu0 %v276
    %304 = vmatprep.subr.mxu0 0.0
    %305 = vmatpush1.msra.mxu0 %v277
    %306 = vmatprep.subr.mxu0 0.0
    %307 = vmatpush1.msra.mxu0 %v278
    %308 = vmatprep.subr.mxu0 0.0
    %309 = vmatpush1.msra.mxu0 %v279
    %310 = vmatprep.subr.mxu0 0.0
    %311 = vmatpush1.msra.mxu0 %v280
    %312 = vmatprep.subr.mxu0 0.0
    %313 = vmatpush1.msra.mxu0 %v281
    %314 = vmatprep.subr.mxu0 0.0
    %315 = vmatpush1.msra.mxu0 %v282
    %316 = vmatprep.subr.mxu0 0.0
    %317 = vmatpush1.msra.mxu0 %v283
    %318 = vmatprep.subr.mxu0 0.0
    %319 = vmatpush1.msra.mxu0 %v284
    %320 = vmatprep.subr.mxu0 0.0
    %321 = vmatpush1.msra.mxu0 %v285
    %322 = vmatprep.subr.mxu0 0.0
    %323 = vmatpush1.msra.mxu0 %v286
    %324 = vmatprep.subr.mxu0 0.0
    %325 = vmatpush1.msra.mxu0 %v287
    %326 = vmatprep.subr.mxu0 0.0
    %327 = vmatpush1.msra.mxu0 %v288
    %328 = vmatprep.subr.mxu0 0.0
    %329 = vmatpush1.msra.mxu0 0.0
    %330 = vmatprep.subr.mxu0 0.0
    %331 = vmatpush1.msra.mxu0 0.0
    %332 = vmatprep.subr.mxu0 0.0
    %333 = vmatpush1.msra.mxu0 0.0
    %334 = vmatprep.subr.mxu0 0.0
    %335 = vmatpush1.msra.mxu0 0.0
    %336 = vmatprep.subr.mxu0 0.0
    %337 = vmatpush1.msra.mxu0 0.0
    %338 = vmatprep.subr.mxu0 0.0
    %339 = vmatpush1.msra.mxu0 0.0
    %340 = vmatprep.subr.mxu0 0.0
    %341 = vmatpush1.msra.mxu0 0.0
    %342 = vmatprep.subr.mxu0 0.0
    %343 = vmatpush1.msra.mxu0 0.0
    %344 = vmatprep.subr.mxu0 0.0
    %345 = vmatpush1.msra.mxu0 0.0
    %346 = vmatprep.subr.mxu0 0.0
    %347 = vmatpush1.msra.mxu0 0.0
    %348 = vmatprep.subr.mxu0 0.0
    %349 = vmatpush1.msra.mxu0 0.0
    %350 = vmatprep.subr.mxu0 0.0
    %351 = vmatpush1.msra.mxu0 0.0
    %352 = vmatprep.subr.mxu0 0.0
    %353 = vmatpush1.msra.mxu0 0.0
    %354 = vmatprep.subr.mxu0 0.0
    %355 = vmatpush1.msra.mxu0 0.0
    %356 = vmatprep.subr.mxu0 0.0
    %357 = vmatpush1.msra.mxu0 0.0
    %358 = vmatprep.subr.mxu0 0.0
    %359 = vmatpush1.msra.mxu0 0.0
    %360 = vmatprep.mubr.f32.mxu0 0.0
    %361 = vmatmul.mubr.f32.gmra.mrb[0].mxu0 %v272
    %v362 = vpop.f32.mrb[0].mxu0
    %v363 = vadd.f32 %v294, %v362
    %v364 = vpop.f32.mrb[0].mxu0
    %365 = vdwg.mxu0
    %v366 = vmax.f32 %v363, 0.0
    %vm367 = vcmask 408576
    %368 = vst.msk [vmem:[#allocation11] sm:$0xff] %vm367, %v366
    // Predicated region
    $region46: #{input_sub_block_forward.1} parent=1 // pred_check
      _
    $region47: #{input_sub_block_forward.1} parent=1 // pred_check_branch
      %370 = sbr.rel (0) target = $region49
    $region48: #{input_sub_block_forward.1} parent=1 // pred_region
      %s372 = ssub.s32 128, 128
      %373 = vsyncadd [#allocation5], %s372
      %s375 = sshll.u32 [#allocation11], 4
      %s376 = int_to_ptr.vmem [resolvable:$true] %s375
      %378 = dma.vmem_to_hbm [thread:$0]  %s376, 128, %s7, [#allocation5]
    $region49: #{input_sub_block_forward.1} parent=1 // pred_fallthru
      _
    // Predicated region
    $region50: #{input_sub_block_forward.1} parent=1 // pred_check
      _
    $region51: #{input_sub_block_forward.1} parent=1 // pred_check_branch
      %380 = sbr.rel (0) target = $region53
    $region52: #{input_sub_block_forward.1} parent=1 // pred_region
      %381 = dma.done [#allocation5], 128
    $region53: #{input_sub_block_forward.1} parent=1 // pred_fallthru
      _
    %382 = vsyncpa [#allocation4], 1
    %383 = vsyncpa [#allocation7], 1
    %384 = vsyncpa [#allocation10], 1
    %385 = vsyncpa [#allocation5], 1

</llo_original>
